<compile_context>
chip_gen: v7x
topology: tpu7x:2x2x1
jax: 0.10.0
libtpu: 0.0.40
codegen_flags: <defaults>
</compile_context>

<pallas_src>
import numpy as np
import jax
import jax.numpy as jnp
from jax.experimental import pallas as pl
from jax.experimental.pallas import tpu as pltpu


_VMEM = pl.BlockSpec(memory_space=pltpu.MemorySpace.VMEM)
_SMEM = pl.BlockSpec(memory_space=pltpu.MemorySpace.SMEM)


# ------------------------- neighbor metadata prep ---------------------------

def prepare_neighbor_meta(neighbor_by_degree, degree_list):
    """Flatten per-degree neighbor index tables into 1-D int32 arrays (node /
    edge) plus static Python metadata per degree group.  Row offsets follow the
    torch.cat(degree_activation_list, dim=0) ordering convention."""
    groups = []
    node_flat, edge_flat = [], []
    row_off = 0
    flat_off = 0
    for d_idx, degree in enumerate(degree_list):
        node_idx = np.asarray(neighbor_by_degree[degree]["node"], dtype=np.int32)
        edge_idx = np.asarray(neighbor_by_degree[degree]["edge"], dtype=np.int32)
        n_d = int(node_idx.shape[0])
        if n_d == 0:
            continue
        groups.append(dict(d_idx=d_idx, degree=int(degree), count=n_d,
                           row_off=row_off, flat_off=flat_off))
        if degree > 0:
            node_flat.append(node_idx.reshape(-1))
            edge_flat.append(edge_idx.reshape(-1))
            flat_off += n_d * int(degree)
        row_off += n_d
    node_flat = np.concatenate(node_flat) if node_flat else np.zeros((1,), np.int32)
    edge_flat = np.concatenate(edge_flat) if edge_flat else np.zeros((1,), np.int32)
    return dict(groups=groups, total_rows=row_off,
                node_idx=jnp.asarray(node_flat), edge_idx=jnp.asarray(edge_flat))


def _group_stride(gw):
    # Lane-aligned column stride per degree group so every group's feature
    # block stays inside whole 128-lane tiles (no boundary-crossing stores).
    if gw <= 128:
        return pl.next_power_of_2(gw)
    return ((gw + 127) // 128) * 128


# --------------------- fused GraphDegreeConv kernel --------------------------

def _make_conv_kernel(groups, node_size, edge_size, stride):
    ns, es = node_size, edge_size

    def kernel(node_idx_ref, edge_idx_ref, node_ref, edge_ref,
               w_self_ref, w_deg_ref, bias_ref, out_ref, summed_ref):
        # Packed per-group neighbor-sum scratch.  Degree-0 groups and the lane
        # padding simply stay zero -> zero neighbor activation for those rows.
        summed_ref[...] = jnp.zeros_like(summed_ref)

        # On-chip gather + neighbor sum; indices come from SMEM.
        for g, grp in enumerate(groups):
            degree, n_d = grp["degree"], grp["count"]
            if degree == 0 or n_d == 0:
                continue
            row_off, flat_off, base = grp["row_off"], grp["flat_off"], g * stride

            def row_body(r, carry, degree=degree, row_off=row_off,
                         flat_off=flat_off, base=base):
                nsum = jnp.zeros((1, ns), jnp.float32)
                esum = jnp.zeros((1, es), jnp.float32)
                for j in range(degree):                       # static, small
                    k = flat_off + r * degree + j
                    ni = node_idx_ref[k]
                    ei = edge_idx_ref[k]
                    nsum = nsum + node_ref[pl.ds(ni, 1), :]
                    esum = esum + edge_ref[pl.ds(ei, 1), :]
                row = row_off + r
                summed_ref[pl.ds(row, 1), base:base + ns] = nsum
                summed_ref[pl.ds(row, 1), base + ns:base + ns + es] = esum
                return carry

            if n_d <= 8:                       # tiny group: unroll statically
                for r in range(n_d):
                    row_body(r, 0)
            else:
                jax.lax.fori_loop(0, n_d, row_body, 0)

        # Fused linear algebra: a single MXU dot covers every degree group.
        self_repr = jnp.dot(node_ref[...], w_self_ref[...],
                            preferred_element_type=jnp.float32)
        nbr_repr = jnp.dot(summed_ref[...], w_deg_ref[...],
                           preferred_element_type=jnp.float32)
        act = self_repr + nbr_repr + bias_ref[...]

        # BatchNorm1d(output, affine=False) in training mode: batch statistics,
        # biased variance, eps=1e-5, then ReLU.
        # TODO(synk): running_mean / running_var buffers are not tracked (they
        # do not affect the training-mode forward output).
        mean = jnp.mean(act, axis=0, keepdims=True)
        var = jnp.mean((act - mean) ** 2, axis=0, keepdims=True)
        normed = (act - mean) * jax.lax.rsqrt(var + 1e-5)
        out_ref[...] = jnp.maximum(normed, 0.0).astype(out_ref.dtype)

    return kernel


def graph_degree_conv(node_repr, edge_repr, layer_params, nbr_meta):
    groups = nbr_meta["groups"]
    N, ns = node_repr.shape
    es = edge_repr.shape[1]
    out_size = layer_params["w_self"].shape[1]
    if nbr_meta["total_rows"] != N:
        raise ValueError("node rows must be ordered by degree group "
                         "(total group rows != number of node rows)")
    gw = ns + es
    stride = _group_stride(gw)
    G = len(groups)

    # Block-stack per-degree weights so their row blocks line up with the
    # lane-aligned column blocks of the in-kernel scratch.
    w_deg = jnp.zeros((G * stride, out_size), jnp.float32)
    for g, grp in enumerate(groups):
        w_deg = w_deg.at[g * stride:g * stride + gw, :].set(
            layer_params["w_degree"][grp["d_idx"]])

    kernel = _make_conv_kernel(groups, ns, es, stride)
    return pl.pallas_call(
        kernel,
        out_shape=jax.ShapeDtypeStruct((N, out_size), jnp.float32),
        in_specs=[_SMEM, _SMEM, _VMEM, _VMEM, _VMEM, _VMEM, _VMEM],
        out_specs=_VMEM,
        scratch_shapes=[pltpu.VMEM((N, G * stride), jnp.float32)],
    )(nbr_meta["node_idx"], nbr_meta["edge_idx"], node_repr, edge_repr,
      layer_params["w_self"], w_deg, layer_params["bias"])


# --------------------- fused fingerprint-update kernel -----------------------

def _fp_update_kernel(node_ref, w_ref, b_ref, pool_ref, out_ref):
    logits = jnp.dot(node_ref[...], w_ref[...],
                     preferred_element_type=jnp.float32) + b_ref[...]
    m = jnp.max(logits, axis=1, keepdims=True)
    e = jnp.exp(logits - m)
    probs = e / jnp.sum(e, axis=1, keepdims=True)
    out_ref[...] = jnp.dot(pool_ref[...], probs,
                           preferred_element_type=jnp.float32).astype(out_ref.dtype)


def fingerprint_update(node_repr, out_layer, pool):
    B = pool.shape[0]
    O = out_layer["w"].shape[1]
    return pl.pallas_call(
        _fp_update_kernel,
        out_shape=jax.ShapeDtypeStruct((B, O), jnp.float32),
        in_specs=[_VMEM, _VMEM, _VMEM, _VMEM],
        out_specs=_VMEM,
    )(node_repr, out_layer["w"], out_layer["b"], pool)


# ----------------------- NeuralFingerprint forward ---------------------------

def neural_fingerprint(params, node_repr, edge_repr, nbr_meta, pool):
    fp_size = params["out_layers"][0]["w"].shape[1]
    fingerprint = jnp.zeros((pool.shape[0], fp_size), jnp.float32)
    node_h = node_repr
    for i, conv in enumerate(params["conv_layers"]):
        fingerprint = fingerprint + fingerprint_update(
            node_h, params["out_layers"][i], pool)
        node_h = graph_degree_conv(node_h, edge_repr, conv, nbr_meta)
    fingerprint = fingerprint + fingerprint_update(
        node_h, params["out_layers"][-1], pool)
    return fingerprint[:, None, :]           # torch .unsqueeze(1)


# ------------------------- pure-JAX reference --------------------------------

def neural_fingerprint_ref(params, node_repr, edge_repr, neighbor_by_degree,
                           degree_list, pool):
    def conv_ref(layer, node_h):
        acts = []
        for d_idx, degree in enumerate(degree_list):
            node_idx = neighbor_by_degree[degree]["node"]
            edge_idx = neighbor_by_degree[degree]["edge"]
            if node_idx.shape[0] == 0:
                continue
            if degree == 0:
                acts.append(jnp.zeros((node_idx.shape[0],
                                       layer["w_self"].shape[1]), jnp.float32))
            else:
                stacked = jnp.concatenate(
                    [node_h[node_idx], edge_repr[edge_idx]], axis=2)
                summed = jnp.sum(stacked, axis=1)
                acts.append(summed @ layer["w_degree"][d_idx])
        nbr = jnp.concatenate(acts, axis=0)
        act = node_h @ layer["w_self"] + nbr + layer["bias"]
        mean = jnp.mean(act, axis=0, keepdims=True)
        var = jnp.mean((act - mean) ** 2, axis=0, keepdims=True)
        return jnp.maximum((act - mean) / jnp.sqrt(var + 1e-5), 0.0)

    def fp_ref(out_layer, node_h):
        probs = jax.nn.softmax(node_h @ out_layer["w"] + out_layer["b"], axis=1)
        return pool @ probs

    fp_size = params["out_layers"][0]["w"].shape[1]
    fp = jnp.zeros((pool.shape[0], fp_size), jnp.float32)
    node_h = node_repr
    for i, conv in enumerate(params["conv_layers"]):
        fp = fp + fp_ref(params["out_layers"][i], node_h)
        node_h = conv_ref(conv, node_h)
    fp = fp + fp_ref(params["out_layers"][-1], node_h)
    return fp[:, None, :]


# ---------------------------------- main -------------------------------------

if __name__ == "__main__":
    node_size, edge_size = 8, 4
    conv_layer_sizes = [32, 32]
    fp_size = 16                       # fingerprint output_size
    degree_list = [0, 1, 2, 3]
    counts = [4, 4, 4, 4]              # nodes per degree group (N = 16)
    N = sum(counts)
    E = sum(d * c for d, c in zip(degree_list, counts))   # 24 edges
    B = 2                              # molecules in the batch

    key = jax.random.PRNGKey(0)
    keys = jax.random.split(key, 8)

    node_repr = jax.random.normal(keys[0], (N, node_size), jnp.float32)
    edge_repr = jax.random.normal(keys[1], (E, edge_size), jnp.float32)

    layers_sizes = [node_size] + conv_layer_sizes
    out_layers = []
    for i, in_sz in enumerate(layers_sizes):
        kw = jax.random.fold_in(keys[2], i)
        kb = jax.random.fold_in(keys[3], i)
        out_layers.append({
            "w": 0.1 * jax.random.normal(kw, (in_sz, fp_size), jnp.float32),
            "b": 0.1 * jax.random.normal(kb, (1, fp_size), jnp.float32),
        })
    conv_layers = []
    for i, (prev, nxt) in enumerate(zip(layers_sizes[:-1], layers_sizes[1:])):
        kws = jax.random.fold_in(keys[4], i)
        conv_layers.append({
            "w_self": 0.1 * jax.random.normal(kws, (prev, nxt), jnp.float32),
            "w_degree": [0.1 * jax.random.normal(
                jax.random.fold_in(keys[5], i * 10 + d),
                (prev + edge_size, nxt), jnp.float32)
                for d in range(len(degree_list))],
            "bias": jnp.zeros((1, nxt), jnp.float32),      # torch.zeros(1, O)
        })
    params = {"out_layers": out_layers, "conv_layers": conv_layers}

    # neighbor_by_degree: node rows are ordered by degree group.
    neighbor_by_degree = {}
    edge_cursor = 0
    for degree, c in zip(degree_list, counts):
        nk = jax.random.fold_in(keys[6], degree)
        if degree > 0:
            node_idx = jax.random.randint(nk, (c, degree), 0, N, jnp.int32)
            edge_idx = jnp.arange(edge_cursor, edge_cursor + c * degree,
                                  dtype=jnp.int32).reshape(c, degree)
        else:
            node_idx = jnp.zeros((c, 0), jnp.int32)
            edge_idx = jnp.zeros((c, 0), jnp.int32)
        edge_cursor += c * degree
        neighbor_by_degree[degree] = {"node": node_idx, "edge": edge_idx}

    # Batch pooling matrix (batch_idx as a dense [B, N] membership matrix).
    pool_np = np.zeros((B, N), np.float32)
    pool_np[0, :N // 2] = 1.0
    pool_np[1, N // 2:] = 1.0
    pool = jnp.asarray(pool_np)

    nbr_meta = prepare_neighbor_meta(neighbor_by_degree, degree_list)

    out = neural_fingerprint(params, node_repr, edge_repr, nbr_meta, pool)
    out = jax.block_until_ready(out)

    ref = neural_fingerprint_ref(params, node_repr, edge_repr,
                                 neighbor_by_degree, degree_list, pool)
    np.testing.assert_allclose(np.asarray(out), np.asarray(ref),
                               rtol=1e-3, atol=1e-3)

    print("KERNEL_OK")
</pallas_src>

<mosaic_0001>
module attributes {stable_mosaic.version = 11 : i64} {
  func.func @_fp_update_kernel(%arg0: memref<16x8xf32, #tpu.memory_space<vmem>>, %arg1: memref<8x16xf32, #tpu.memory_space<vmem>>, %arg2: memref<1x16xf32, #tpu.memory_space<vmem>>, %arg3: memref<2x16xf32, #tpu.memory_space<vmem>>, %arg4: memref<2x16xf32, #tpu.memory_space<vmem>>) attributes {dimension_semantics = [], scalar_prefetch = 0 : i64, scratch_operands = 0 : i64, tpu.core_type = #tpu.core_type<tc>} {
    %c0 = arith.constant 0 : index
    %c0_0 = arith.constant 0 : index
    %0 = vector.load %arg0[%c0, %c0_0] : memref<16x8xf32, #tpu.memory_space<vmem>>, vector<16x8xf32>
    %c0_1 = arith.constant 0 : index
    %c0_2 = arith.constant 0 : index
    %1 = vector.load %arg1[%c0_1, %c0_2] : memref<8x16xf32, #tpu.memory_space<vmem>>, vector<8x16xf32>
    %cst = arith.constant dense<0.000000e+00> : vector<16x16xf32>
    %2 = tpu.matmul %0, %1, %cst {dimension_numbers = #tpu.dot_dimension_numbers<[1], [0], [0], [1], [0, 0, 1, 1], [], []>} : vector<16x8xf32>, vector<8x16xf32>, vector<16x16xf32> -> vector<16x16xf32>
    %c0_3 = arith.constant 0 : index
    %c0_4 = arith.constant 0 : index
    %3 = vector.load %arg2[%c0_3, %c0_4] : memref<1x16xf32, #tpu.memory_space<vmem>>, vector<1x16xf32>
    %4 = vector.broadcast %3 : vector<1x16xf32> to vector<16x16xf32>
    %5 = arith.addf %2, %4 : vector<16x16xf32>
    %cst_5 = arith.constant dense<0xFF800000> : vector<16xf32>
    %6 = vector.multi_reduction <maximumf>, %5, %cst_5 [1] : vector<16x16xf32> to vector<16xf32>
    %7 = vector.shape_cast %6 : vector<16xf32> to vector<16x1xf32>
    %8 = vector.broadcast %7 : vector<16x1xf32> to vector<16x16xf32>
    %9 = arith.subf %5, %8 : vector<16x16xf32>
    %10 = math.exp %9 : vector<16x16xf32>
    %cst_6 = arith.constant dense<0.000000e+00> : vector<16xf32>
    %11 = vector.multi_reduction <add>, %10, %cst_6 [1] : vector<16x16xf32> to vector<16xf32>
    %12 = vector.shape_cast %11 : vector<16xf32> to vector<16x1xf32>
    %13 = vector.broadcast %12 : vector<16x1xf32> to vector<16x16xf32>
    %14 = arith.divf %10, %13 : vector<16x16xf32>
    %c0_7 = arith.constant 0 : index
    %c0_8 = arith.constant 0 : index
    %15 = vector.load %arg3[%c0_7, %c0_8] : memref<2x16xf32, #tpu.memory_space<vmem>>, vector<2x16xf32>
    %cst_9 = arith.constant dense<0.000000e+00> : vector<2x16xf32>
    %16 = tpu.matmul %15, %14, %cst_9 {dimension_numbers = #tpu.dot_dimension_numbers<[1], [0], [0], [1], [0, 0, 1, 1], [], []>} : vector<2x16xf32>, vector<16x16xf32>, vector<2x16xf32> -> vector<2x16xf32>
    %c0_10 = arith.constant 0 : index
    %c0_11 = arith.constant 0 : index
    %17 = vector.load %arg4[%c0_10, %c0_11] : memref<2x16xf32, #tpu.memory_space<vmem>>, vector<2x16xf32>
    tpu.vector_store %arg4[%c0_10, %c0_11], %16 {strides = array<i32>} : memref<2x16xf32, #tpu.memory_space<vmem>>, vector<2x16xf32>,
    return
  }
}

</mosaic_0001>

<llo_original>
// kernel: tpu_custom_call.1
$region0: #{tpu_custom_call.1}
  #allocation0 [shape = 'u32[]', space=smem, size = 0x4, offset = 0x4, fixed_abs, tag = 'smem constant byte address 0x4 - core index']
  #allocation1 [shape = 'u32[144,128]{1,0:T(1,128)}', space=vmem, size = 0x12000, scoped, tag = 'internal scratch']
  %s0 = inlined_call_operand.vmem [shape: f32[16,8], index: 0, kind: input, shape index: {}]
  %s1 = inlined_call_operand.vmem [shape: f32[8,16], index: 1, kind: input, shape index: {}]
  %s2 = inlined_call_operand.vmem [shape: f32[1,16], index: 2, kind: input, shape index: {}]
  %s3 = inlined_call_operand.vmem [shape: f32[2,16], index: 3, kind: input, shape index: {}]
  %s4 = inlined_call_operand.hbm [shape: f32[2,16], index: 4, kind: output, shape index: {}]
  %s5 = sld [smem:[#allocation0]]
  $region26: #{tpu_custom_call.1} parent=0
    _
  %s7 = ssub.s32 1, %s5
  %s8 = scalar_select 0, %s7, %s5
  $region1: #{tpu_custom_call.1} parent=0
    #allocation2 [shape = 'u8[1024]{0}', space=vmem, size = 0x400, scoped, tag = 'output window, operand 0, single buffered']
    #allocation3 [shape = 's32[1]{0}', space=sflag, size = 0x4, scoped, tag = 'scoped memory for tpu_custom_call.1']
    %9 = vsyncpa [#allocation3], 0
    // Predicated region
    $region2: #{tpu_custom_call.1} parent=1 // pred_check
      _
    $region3: #{tpu_custom_call.1} parent=1 // pred_check_branch
      %11 = sbr.rel (0) target = $region5
    $region4: #{tpu_custom_call.1} parent=1 // pred_region
      _
    $region5: #{tpu_custom_call.1} parent=1 // pred_fallthru
      _
    // Predicated region
    $region6: #{tpu_custom_call.1} parent=1 // pred_check
      _
    $region7: #{tpu_custom_call.1} parent=1 // pred_check_branch
      %13 = sbr.rel (0) target = $region9
    $region8: #{tpu_custom_call.1} parent=1 // pred_region
      _
    $region9: #{tpu_custom_call.1} parent=1 // pred_fallthru
      _
    // Predicated region
    $region10: #{tpu_custom_call.1} parent=1 // pred_check
      _
    $region11: #{tpu_custom_call.1} parent=1 // pred_check_branch
      %15 = sbr.rel (0) target = $region13
    $region12: #{tpu_custom_call.1} parent=1 // pred_region
      _
    $region13: #{tpu_custom_call.1} parent=1 // pred_fallthru
      _
    // Predicated region
    $region14: #{tpu_custom_call.1} parent=1 // pred_check
      _
    $region15: #{tpu_custom_call.1} parent=1 // pred_check_branch
      %17 = sbr.rel (0) target = $region17
    $region16: #{tpu_custom_call.1} parent=1 // pred_region
      _
    $region17: #{tpu_custom_call.1} parent=1 // pred_fallthru
      _
    %v18 = vld [vmem:[%s0] sm:$0xff]
    %v19 = vld [vmem:[%s0 + $0x8] sm:$0xff]
    %v20 = vld [vmem:[%s1] sm:$0xff]
    %v21 = vld [vmem:[%s2] sm:$0x1]
    %v23 = vlaneseq
    %v24 = vshrl.u32 %v23, 7
    %v25 = vsub.s32 0, %v24
    %v26 = vrot.slane %v21, %v25
    %vm28 = vcmask 64512
    %v30 = vsel %vm28, %v18, 0
    %v33 = vsel %vm28, %v19, 0
    %35 = vmatprep.subr.mxu0 0.0
    %36 = vmatpush1.msra.mxu0 %v20
    %37 = vmatprep.subr.mxu0 0.0
    %38 = vmatpush1.msra.mxu0 0.0
    %39 = vmatprep.subr.mxu0 0.0
    %40 = vmatpush1.msra.mxu0 0.0
    %41 = vmatprep.subr.mxu0 0.0
    %42 = vmatpush1.msra.mxu0 0.0
    %43 = vmatprep.subr.mxu0 0.0
    %44 = vmatpush1.msra.mxu0 0.0
    %45 = vmatprep.subr.mxu0 0.0
    %46 = vmatpush1.msra.mxu0 0.0
    %47 = vmatprep.subr.mxu0 0.0
    %48 = vmatpush1.msra.mxu0 0.0
    %49 = vmatprep.subr.mxu0 0.0
    %50 = vmatpush1.msra.mxu0 0.0
    %51 = vmatprep.subr.mxu0 0.0
    %52 = vmatpush1.msra.mxu0 0.0
    %53 = vmatprep.subr.mxu0 0.0
    %54 = vmatpush1.msra.mxu0 0.0
    %55 = vmatprep.subr.mxu0 0.0
    %56 = vmatpush1.msra.mxu0 0.0
    %57 = vmatprep.subr.mxu0 0.0
    %58 = vmatpush1.msra.mxu0 0.0
    %59 = vmatprep.subr.mxu0 0.0
    %60 = vmatpush1.msra.mxu0 0.0
    %61 = vmatprep.subr.mxu0 0.0
    %62 = vmatpush1.msra.mxu0 0.0
    %63 = vmatprep.subr.mxu0 0.0
    %64 = vmatpush1.msra.mxu0 0.0
    %65 = vmatprep.subr.mxu0 0.0
    %66 = vmatpush1.msra.mxu0 0.0
    %67 = vmatprep.subr.mxu0 0.0
    %68 = vmatpush1.msra.mxu0 0.0
    %69 = vmatprep.subr.mxu0 0.0
    %70 = vmatpush1.msra.mxu0 0.0
    %71 = vmatprep.subr.mxu0 0.0
    %72 = vmatpush1.msra.mxu0 0.0
    %73 = vmatprep.subr.mxu0 0.0
    %74 = vmatpush1.msra.mxu0 0.0
    %75 = vmatprep.subr.mxu0 0.0
    %76 = vmatpush1.msra.mxu0 0.0
    %77 = vmatprep.subr.mxu0 0.0
    %78 = vmatpush1.msra.mxu0 0.0
    %79 = vmatprep.subr.mxu0 0.0
    %80 = vmatpush1.msra.mxu0 0.0
    %81 = vmatprep.subr.mxu0 0.0
    %82 = vmatpush1.msra.mxu0 0.0
    %83 = vmatprep.subr.mxu0 0.0
    %84 = vmatpush1.msra.mxu0 0.0
    %85 = vmatprep.subr.mxu0 0.0
    %86 = vmatpush1.msra.mxu0 0.0
    %87 = vmatprep.subr.mxu0 0.0
    %88 = vmatpush1.msra.mxu0 0.0
    %89 = vmatprep.subr.mxu0 0.0
    %90 = vmatpush1.msra.mxu0 0.0
    %91 = vmatprep.subr.mxu0 0.0
    %92 = vmatpush1.msra.mxu0 0.0
    %93 = vmatprep.subr.mxu0 0.0
    %94 = vmatpush1.msra.mxu0 0.0
    %95 = vmatprep.subr.mxu0 0.0
    %96 = vmatpush1.msra.mxu0 0.0
    %97 = vmatprep.subr.mxu0 0.0
    %98 = vmatpush1.msra.mxu0 0.0
    %99 = vmatprep.mubr.f32.mxu0 0.0
    %100 = vmatmul.mubr.f32.gmra.mrb[0].mxu0 %v30
    %v101 = vpop.f32.mrb[0].mxu0
    %v102 = vadd.f32 %v26, %v101
    %v103 = vpop.f32.mrb[0].mxu0
    %104 = vmatprep.mubr.f32.mxu0 0.0
    %105 = vmatmul.mubr.f32.gmra.mrb[0].mxu0 %v33
    %v106 = vpop.f32.mrb[0].mxu0
    %v107 = vadd.f32 %v26, %v106
    %v108 = vpop.f32.mrb[0].mxu0
    %109 = vdwg.mxu0
    %vm110 = vcmask 130048
    %v111 = vsel %vm110, %v102, -inf
    %112 = vmax.xlane.f32.xlu0 %v111
    %v113 = vpop.xlane.xlu0 %112
    %v114 = vsel %vm110, %v107, -inf
    %115 = vmax.xlane.f32.xlu0 %v114
    %v116 = vpop.xlane.xlu0 %115
    %v117 = vsub.f32 %v102, %v113
    %v118 = vsub.f32 %v107, %v116
    %v119 = vmul.f32 %v117, 1.442695
    %v120 = vpow.pop %v119
    %v121 = vmul.f32 %v118, 1.442695
    %v122 = vpow.pop %v121
    %v123 = vsel %vm110, %v120, 0.0
    %124 = vadd.xlane.f32.xlu0 %v123
    %v125 = vpop.xlane.xlu0 %124
    %v126 = vsel %vm110, %v122, 0.0
    %127 = vadd.xlane.f32.xlu0 %v126
    %v128 = vpop.xlane.xlu0 %127
    %v129 = vrcp.pop %v125
    %v130 = vmul.f32 %v120, %v129
    %v131 = vrcp.pop %v128
    %v132 = vmul.f32 %v122, %v131
    %v133 = vld [vmem:[%s3] sm:$0x3]
    %v135 = vsel %vm110, %v133, 0
    %137 = vmatprep.subr.mxu0 0.0
    %138 = vmatpush1.msra.mxu0 %v130
    %139 = vmatprep.subr.mxu0 0.0
    %140 = vmatpush1.msra.mxu0 %v132
    %141 = vmatprep.subr.mxu0 0.0
    %142 = vmatpush1.msra.mxu0 0.0
    %143 = vmatprep.subr.mxu0 0.0
    %144 = vmatpush1.msra.mxu0 0.0
    %145 = vmatprep.subr.mxu0 0.0
    %146 = vmatpush1.msra.mxu0 0.0
    %147 = vmatprep.subr.mxu0 0.0
    %148 = vmatpush1.msra.mxu0 0.0
    %149 = vmatprep.subr.mxu0 0.0
    %150 = vmatpush1.msra.mxu0 0.0
    %151 = vmatprep.subr.mxu0 0.0
    %152 = vmatpush1.msra.mxu0 0.0
    %153 = vmatprep.subr.mxu0 0.0
    %154 = vmatpush1.msra.mxu0 0.0
    %155 = vmatprep.subr.mxu0 0.0
    %156 = vmatpush1.msra.mxu0 0.0
    %157 = vmatprep.subr.mxu0 0.0
    %158 = vmatpush1.msra.mxu0 0.0
    %159 = vmatprep.subr.mxu0 0.0
    %160 = vmatpush1.msra.mxu0 0.0
    %161 = vmatprep.subr.mxu0 0.0
    %162 = vmatpush1.msra.mxu0 0.0
    %163 = vmatprep.subr.mxu0 0.0
    %164 = vmatpush1.msra.mxu0 0.0
    %165 = vmatprep.subr.mxu0 0.0
    %166 = vmatpush1.msra.mxu0 0.0
    %167 = vmatprep.subr.mxu0 0.0
    %168 = vmatpush1.msra.mxu0 0.0
    %169 = vmatprep.subr.mxu0 0.0
    %170 = vmatpush1.msra.mxu0 0.0
    %171 = vmatprep.subr.mxu0 0.0
    %172 = vmatpush1.msra.mxu0 0.0
    %173 = vmatprep.subr.mxu0 0.0
    %174 = vmatpush1.msra.mxu0 0.0
    %175 = vmatprep.subr.mxu0 0.0
    %176 = vmatpush1.msra.mxu0 0.0
    %177 = vmatprep.subr.mxu0 0.0
    %178 = vmatpush1.msra.mxu0 0.0
    %179 = vmatprep.subr.mxu0 0.0
    %180 = vmatpush1.msra.mxu0 0.0
    %181 = vmatprep.subr.mxu0 0.0
    %182 = vmatpush1.msra.mxu0 0.0
    %183 = vmatprep.subr.mxu0 0.0
    %184 = vmatpush1.msra.mxu0 0.0
    %185 = vmatprep.subr.mxu0 0.0
    %186 = vmatpush1.msra.mxu0 0.0
    %187 = vmatprep.subr.mxu0 0.0
    %188 = vmatpush1.msra.mxu0 0.0
    %189 = vmatprep.subr.mxu0 0.0
    %190 = vmatpush1.msra.mxu0 0.0
    %191 = vmatprep.subr.mxu0 0.0
    %192 = vmatpush1.msra.mxu0 0.0
    %193 = vmatprep.subr.mxu0 0.0
    %194 = vmatpush1.msra.mxu0 0.0
    %195 = vmatprep.subr.mxu0 0.0
    %196 = vmatpush1.msra.mxu0 0.0
    %197 = vmatprep.subr.mxu0 0.0
    %198 = vmatpush1.msra.mxu0 0.0
    %199 = vmatprep.subr.mxu0 0.0
    %200 = vmatpush1.msra.mxu0 0.0
    %201 = vmatprep.mubr.f32.mxu0 0.0
    %202 = vmatmul.mubr.f32.gmra.mrb[0].mxu0 %v135
    %v203 = vpop.f32.mrb[0].mxu0
    %v204 = vadd.f32 0.0, %v203
    %v205 = vpop.f32.mrb[0].mxu0
    %206 = vdwg.mxu0
    %vm207 = vcmask 123904
    %208 = vst.msk [vmem:[#allocation2] sm:$0x3] %vm207, %v204
    // Predicated region
    $region18: #{tpu_custom_call.1} parent=1 // pred_check
      _
    $region19: #{tpu_custom_call.1} parent=1 // pred_check_branch
      %210 = sbr.rel (0) target = $region21
    $region20: #{tpu_custom_call.1} parent=1 // pred_region
      %s212 = ssub.s32 32, 32
      %213 = vsyncadd [#allocation3], %s212
      %s215 = sshll.u32 [#allocation2], 4
      %s216 = int_to_ptr.vmem [resolvable:$true] %s215
      %218 = dma.vmem_to_hbm [thread:$0]  %s216, 32, %s4, [#allocation3]
    $region21: #{tpu_custom_call.1} parent=1 // pred_fallthru
      _
    // Predicated region
    $region22: #{tpu_custom_call.1} parent=1 // pred_check
      _
    $region23: #{tpu_custom_call.1} parent=1 // pred_check_branch
      %220 = sbr.rel (0) target = $region25
    $region24: #{tpu_custom_call.1} parent=1 // pred_region
      %221 = dma.done [#allocation3], 32
    $region25: #{tpu_custom_call.1} parent=1 // pred_fallthru
      _
    %222 = vsyncpa [#allocation3], 1

</llo_original>
